<compile_context>
chip_gen: v5e
topology: v5e:2x2
jax: 0.10.0
libtpu: 0.0.40
codegen_flags: <defaults>
</compile_context>

<pallas_src>
import jax
import jax.numpy as jnp
from jax.experimental import pallas as pl
from jax.experimental.pallas import tpu as pltpu


def _round_up(n: int, m: int) -> int:
    return ((n + m - 1) // m) * m


def _mlp_kernel(x_ref, w1_ref, b1_ref, w2_ref, b2_ref, out_ref, emb_ref):
    # lm1: (TB, dim) @ (dim, E), f32 accumulation on the MXU; bias + ReLU in f32.
    h = jnp.dot(x_ref[...], w1_ref[...], preferred_element_type=jnp.float32)
    h = h + b1_ref[...].astype(jnp.float32)
    emb_f32 = jnp.maximum(h, 0.0)  # ReLU on the VPU

    # Downcast once; reuse for the store and as lm2's LHS (one VPU pass, not two).
    emb_lo = emb_f32.astype(emb_ref.dtype)
    emb_ref[...] = emb_lo

    # lm2: (TB, E) @ (E, C) + bias, f32 accumulation.
    out = jnp.dot(emb_lo, w2_ref[...], preferred_element_type=jnp.float32)
    out = out + b2_ref[...].astype(jnp.float32)
    out_ref[...] = out.astype(out_ref.dtype)


def openml_net_forward(x, w1, b1, w2, b2):
    """Pallas forward pass for openml_Net.

    Args:
      x : (B, ...) input; flattened to (B, dim) like x.view(-1, dim).
      w1: (dim, embSize)         -- transpose of PyTorch lm1.weight
      b1: (embSize,)
      w2: (embSize, num_classes) -- transpose of PyTorch lm2.weight
      b2: (num_classes,)
    Returns:
      (out, emb) with shapes (B, num_classes), (B, embSize)
    """
    dim, emb_size = w1.shape
    num_classes = w2.shape[1]

    x2d = x.reshape(-1, dim)
    b = x2d.shape[0]
    b1r = b1.reshape(1, emb_size)
    b2r = b2.reshape(1, num_classes)

    itemsize = jnp.dtype(x2d.dtype).itemsize
    w_itemsize = jnp.dtype(w1.dtype).itemsize
    # dtype-dependent sublane minimum: 8 for f32, 16 for bf16, 32 for int8/fp8.
    min_sub = max(8, 32 // itemsize)

    # Batch tile: aim for >= 2 grid steps (so v7x's two TensorCores both get work
    # via the "parallel" axis), cap at 512 rows (amortizes per-step overhead on v5e).
    tb = min(512, _round_up(max(pl.cdiv(b, 2), 1), min_sub))
    tb = max(tb, min_sub)

    # --- VMEM budget guard: size against v7x's 64 MiB physical, not 128 MiB. ---
    def _vmem_need(t):
        def tile(r, c, isz):  # conservative (8,128)-padded tile footprint
            return _round_up(r, 8) * _round_up(c, 128) * isz
        # 2x: default double-buffering of every BlockSpec operand.
        return 2 * (
            tile(t, dim, itemsize)                     # x tile
            + tile(t, emb_size, itemsize)              # emb output tile
            + tile(t, num_classes, itemsize)           # out output tile
            + tile(dim, emb_size, w_itemsize)          # w1 (VMEM-resident)
            + tile(1, emb_size, w_itemsize)            # b1
            + tile(emb_size, num_classes, w_itemsize)  # w2
            + tile(1, num_classes, w_itemsize)         # b2
        )

    budget = 28 * 1024 * 1024
    while _vmem_need(tb) > budget and tb > min_sub:
        tb = max(min_sub, _round_up(tb // 2, min_sub))
    # Note: if the resident weights alone ever exceed the budget (very large dim),
    # the contraction axis should additionally be tiled with an f32 accumulator
    # scratch and an "arbitrary" reduction grid axis; not needed at these sizes.

    # No wrapper-side batch padding: Pallas masks the ragged last block itself.
    grid = (pl.cdiv(b, tb),)

    vmem_limit = int(min(60 * 1024 * 1024,
                         max(2 * _vmem_need(tb), 16 * 1024 * 1024)))

    # Advisory cost estimate (kernel is HBM-bandwidth bound).
    flops = 2 * b * (dim * emb_size + emb_size * num_classes)
    bytes_accessed = (
        (b * dim + b * emb_size + b * num_classes) * itemsize
        + (w1.size + w2.size + b1.size + b2.size) * w_itemsize
    )

    out, emb = pl.pallas_call(
        _mlp_kernel,
        out_shape=(
            jax.ShapeDtypeStruct((b, num_classes), x2d.dtype),
            jax.ShapeDtypeStruct((b, emb_size), x2d.dtype),
        ),
        grid=grid,
        in_specs=[
            # batch-tiled activations
            pl.BlockSpec((tb, dim), lambda i: (i, 0)),
            # VMEM-resident weights / biases (constant index map -> fetched once)
            pl.BlockSpec((dim, emb_size), lambda i: (0, 0)),
            pl.BlockSpec((1, emb_size), lambda i: (0, 0)),
            pl.BlockSpec((emb_size, num_classes), lambda i: (0, 0)),
            pl.BlockSpec((1, num_classes), lambda i: (0, 0)),
        ],
        out_specs=(
            # natural (unpadded) output widths -> no post-call slice copies
            pl.BlockSpec((tb, num_classes), lambda i: (i, 0)),
            pl.BlockSpec((tb, emb_size), lambda i: (i, 0)),
        ),
        compiler_params=pltpu.CompilerParams(
            dimension_semantics=("parallel",),
            vmem_limit_bytes=vmem_limit,
        ),
        cost_estimate=pl.CostEstimate(
            flops=flops, transcendentals=0, bytes_accessed=int(bytes_accessed)),
    )(x2d, w1, b1r, w2, b2r)

    return out, emb


if __name__ == "__main__":
    # Small, forward-consistent shapes: batch=8, dim=64, embSize=32, num_classes=10.
    batch, dim, emb_size, num_classes = 8, 64, 32, 10

    key = jax.random.PRNGKey(0)
    kx, kw1, kb1, kw2, kb2 = jax.random.split(key, 5)

    x = jax.random.normal(kx, (batch, dim), dtype=jnp.float32)
    # Deterministic synthetic params (Linear-like scale), stored as (in, out).
    w1 = jax.random.normal(kw1, (dim, emb_size), dtype=jnp.float32) * (1.0 / jnp.sqrt(dim))
    b1 = jax.random.normal(kb1, (emb_size,), dtype=jnp.float32) * 0.01
    w2 = jax.random.normal(kw2, (emb_size, num_classes), dtype=jnp.float32) * (1.0 / jnp.sqrt(emb_size))
    b2 = jax.random.normal(kb2, (num_classes,), dtype=jnp.float32) * 0.01

    fwd = jax.jit(openml_net_forward)
    out, emb = fwd(x, w1, b1, w2, b2)
    jax.block_until_ready((out, emb))

    # Cross-check against plain-JAX reference of the PyTorch forward.
    emb_ref = jnp.maximum(x @ w1 + b1, 0.0)
    out_ref = emb_ref @ w2 + b2
    assert out.shape == (batch, num_classes) and emb.shape == (batch, emb_size)
    assert jnp.allclose(out, out_ref, atol=1e-5), "out mismatch"
    assert jnp.allclose(emb, emb_ref, atol=1e-5), "emb mismatch"

    # Second check: batch not a multiple of the tile (exercises the ragged-tail path,
    # grid=(2,) with a partial last block -- no wrapper padding involved).
    batch2 = 13
    x2 = jax.random.normal(jax.random.PRNGKey(1), (batch2, dim), dtype=jnp.float32)
    out2, emb2 = fwd(x2, w1, b1, w2, b2)
    jax.block_until_ready((out2, emb2))
    emb2_ref = jnp.maximum(x2 @ w1 + b1, 0.0)
    out2_ref = emb2_ref @ w2 + b2
    assert out2.shape == (batch2, num_classes) and emb2.shape == (batch2, emb_size)
    assert jnp.allclose(out2, out2_ref, atol=1e-5), "out mismatch (ragged batch)"
    assert jnp.allclose(emb2, emb2_ref, atol=1e-5), "emb mismatch (ragged batch)"

    print("KERNEL_OK")
</pallas_src>

<mosaic_0001>
module attributes {stable_mosaic.version = 11 : i64} {
  func.func @_mlp_kernel(%arg0: i32, %arg1: memref<8x64xf32, #tpu.memory_space<vmem>>, %arg2: memref<64x32xf32, #tpu.memory_space<vmem>>, %arg3: memref<1x32xf32, #tpu.memory_space<vmem>>, %arg4: memref<32x10xf32, #tpu.memory_space<vmem>>, %arg5: memref<1x10xf32, #tpu.memory_space<vmem>>, %arg6: memref<8x10xf32, #tpu.memory_space<vmem>>, %arg7: memref<8x32xf32, #tpu.memory_space<vmem>>) attributes {dimension_semantics = [#tpu.dimension_semantics<parallel>], iteration_bounds = array<i64: 1>, scalar_prefetch = 0 : i64, scratch_operands = 0 : i64, tpu.core_type = #tpu.core_type<tc>, window_params = [{transform_indices = @transform_0, window_bounds = array<i64: 8, 64>}, {pipeline_mode = #tpu.pipeline_mode<synchronous>, transform_indices = @transform_1, window_bounds = array<i64: 64, 32>}, {pipeline_mode = #tpu.pipeline_mode<synchronous>, transform_indices = @transform_2, window_bounds = array<i64: 1, 32>}, {pipeline_mode = #tpu.pipeline_mode<synchronous>, transform_indices = @transform_3, window_bounds = array<i64: 32, 10>}, {pipeline_mode = #tpu.pipeline_mode<synchronous>, transform_indices = @transform_4, window_bounds = array<i64: 1, 10>}, {transform_indices = @transform_5, window_bounds = array<i64: 8, 10>}, {transform_indices = @transform_6, window_bounds = array<i64: 8, 32>}]} {
    %c0 = arith.constant 0 : index
    %c0_0 = arith.constant 0 : index
    %0 = vector.load %arg1[%c0, %c0_0] : memref<8x64xf32, #tpu.memory_space<vmem>>, vector<8x64xf32>
    %c0_1 = arith.constant 0 : index
    %c0_2 = arith.constant 0 : index
    %1 = vector.load %arg2[%c0_1, %c0_2] : memref<64x32xf32, #tpu.memory_space<vmem>>, vector<64x32xf32>
    %cst = arith.constant dense<0.000000e+00> : vector<8x32xf32>
    %2 = tpu.matmul %0, %1, %cst {dimension_numbers = #tpu.dot_dimension_numbers<[1], [0], [0], [1], [0, 0, 1, 1], [], []>} : vector<8x64xf32>, vector<64x32xf32>, vector<8x32xf32> -> vector<8x32xf32>
    %c0_3 = arith.constant 0 : index
    %c0_4 = arith.constant 0 : index
    %3 = vector.load %arg3[%c0_3, %c0_4] : memref<1x32xf32, #tpu.memory_space<vmem>>, vector<1x32xf32>
    %4 = vector.broadcast %3 : vector<1x32xf32> to vector<8x32xf32>
    %5 = arith.addf %2, %4 : vector<8x32xf32>
    %cst_5 = arith.constant 0.000000e+00 : f32
    %6 = vector.broadcast %cst_5 : f32 to vector<8x32xf32>
    %7 = arith.maximumf %5, %6 : vector<8x32xf32>
    %c0_6 = arith.constant 0 : index
    %c0_7 = arith.constant 0 : index
    %8 = vector.load %arg7[%c0_6, %c0_7] : memref<8x32xf32, #tpu.memory_space<vmem>>, vector<8x32xf32>
    tpu.vector_store %arg7[%c0_6, %c0_7], %7 {strides = array<i32>} : memref<8x32xf32, #tpu.memory_space<vmem>>, vector<8x32xf32>,
    %c0_8 = arith.constant 0 : index
    %c0_9 = arith.constant 0 : index
    %9 = vector.load %arg4[%c0_8, %c0_9] : memref<32x10xf32, #tpu.memory_space<vmem>>, vector<32x10xf32>
    %cst_10 = arith.constant dense<0.000000e+00> : vector<8x10xf32>
    %10 = tpu.matmul %7, %9, %cst_10 {dimension_numbers = #tpu.dot_dimension_numbers<[1], [0], [0], [1], [0, 0, 1, 1], [], []>} : vector<8x32xf32>, vector<32x10xf32>, vector<8x10xf32> -> vector<8x10xf32>
    %c0_11 = arith.constant 0 : index
    %c0_12 = arith.constant 0 : index
    %11 = vector.load %arg5[%c0_11, %c0_12] : memref<1x10xf32, #tpu.memory_space<vmem>>, vector<1x10xf32>
    %12 = vector.broadcast %11 : vector<1x10xf32> to vector<8x10xf32>
    %13 = arith.addf %10, %12 : vector<8x10xf32>
    %c0_13 = arith.constant 0 : index
    %c0_14 = arith.constant 0 : index
    %14 = vector.load %arg6[%c0_13, %c0_14] : memref<8x10xf32, #tpu.memory_space<vmem>>, vector<8x10xf32>
    tpu.vector_store %arg6[%c0_13, %c0_14], %13 {strides = array<i32>} : memref<8x10xf32, #tpu.memory_space<vmem>>, vector<8x10xf32>,
    return
  }
  func.func @transform_0(%arg0: i32) -> (i32, i32) {
    %c0_i32 = arith.constant 0 : i32
    %c0_i32_0 = arith.constant 0 : i32
    return %arg0, %c0_i32 : i32, i32
  }
  func.func @transform_1(%arg0: i32) -> (i32, i32) {
    %c0_i32 = arith.constant 0 : i32
    %c0_i32_0 = arith.constant 0 : i32
    %c0_i32_1 = arith.constant 0 : i32
    return %c0_i32, %c0_i32_0 : i32, i32
  }
  func.func @transform_2(%arg0: i32) -> (i32, i32) {
    %c0_i32 = arith.constant 0 : i32
    %c0_i32_0 = arith.constant 0 : i32
    %c0_i32_1 = arith.constant 0 : i32
    return %c0_i32, %c0_i32_0 : i32, i32
  }
  func.func @transform_3(%arg0: i32) -> (i32, i32) {
    %c0_i32 = arith.constant 0 : i32
    %c0_i32_0 = arith.constant 0 : i32
    %c0_i32_1 = arith.constant 0 : i32
    return %c0_i32, %c0_i32_0 : i32, i32
  }
  func.func @transform_4(%arg0: i32) -> (i32, i32) {
    %c0_i32 = arith.constant 0 : i32
    %c0_i32_0 = arith.constant 0 : i32
    %c0_i32_1 = arith.constant 0 : i32
    return %c0_i32, %c0_i32_0 : i32, i32
  }
  func.func @transform_5(%arg0: i32) -> (i32, i32) {
    %c0_i32 = arith.constant 0 : i32
    %c0_i32_0 = arith.constant 0 : i32
    return %arg0, %c0_i32 : i32, i32
  }
  func.func @transform_6(%arg0: i32) -> (i32, i32) {
    %c0_i32 = arith.constant 0 : i32
    %c0_i32_0 = arith.constant 0 : i32
    return %arg0, %c0_i32 : i32, i32
  }
}

</mosaic_0001>

<llo_original>
// kernel: openml_net_forward.1
$region0: #{openml_net_forward.1}
  #allocation0 [shape = 'u32[]', space=smem, size = 0x4, offset = 0x4, fixed_abs, tag = 'smem constant byte address 0x4 - core index']
  #allocation1 [shape = 'u32[72,128]{1,0:T(1,128)}', space=vmem, size = 0x9000, scoped, tag = 'internal scratch']
  %s0 = inlined_call_operand.vmem [shape: f32[8,64], index: 0, kind: input, shape index: {}]
  %s1 = inlined_call_operand.vmem [shape: f32[64,32], index: 1, kind: input, shape index: {}]
  %s2 = inlined_call_operand.vmem [shape: f32[1,32], index: 2, kind: input, shape index: {}]
  %s3 = inlined_call_operand.vmem [shape: f32[32,10], index: 3, kind: input, shape index: {}]
  %s4 = inlined_call_operand.vmem [shape: f32[1,10], index: 4, kind: input, shape index: {}]
  %s5 = inlined_call_operand.hbm [shape: f32[8,10], index: 5, kind: output, shape index: {0}]
  %s6 = inlined_call_operand.hbm [shape: f32[8,32], index: 6, kind: output, shape index: {1}]
  %7 = xla_tuple %s5, %s6
  %s8 = sld [smem:[#allocation0]]
  $region38: #{openml_net_forward.1} parent=0
    _
  %s10 = ssub.s32 1, %s8
  %s11 = scalar_select 0, %s10, %s8
  $region1: #{openml_net_forward.1} parent=0
    #allocation2 [shape = 'u8[4096]{0}', space=vmem, size = 0x1000, scoped, tag = 'output window, operand 0, single buffered']
    #allocation3 [shape = 's32[1]{0}', space=sflag, size = 0x4, scoped, tag = 'scoped memory for openml_net_forward.1']
    #allocation4 [shape = 'u8[4096]{0}', space=vmem, size = 0x1000, scoped, tag = 'output window, operand 1, single buffered']
    #allocation5 [shape = 's32[1]{0}', space=sflag, size = 0x4, scoped, tag = 'scoped memory for openml_net_forward.1']
    %12 = vsyncpa [#allocation3], 0
    %13 = vsyncpa [#allocation5], 0
    // Predicated region
    $region2: #{openml_net_forward.1} parent=1 // pred_check
      _
    $region3: #{openml_net_forward.1} parent=1 // pred_check_branch
      %15 = sbr.rel (0) target = $region5
    $region4: #{openml_net_forward.1} parent=1 // pred_region
      _
    $region5: #{openml_net_forward.1} parent=1 // pred_fallthru
      _
    // Predicated region
    $region6: #{openml_net_forward.1} parent=1 // pred_check
      _
    $region7: #{openml_net_forward.1} parent=1 // pred_check_branch
      %17 = sbr.rel (0) target = $region9
    $region8: #{openml_net_forward.1} parent=1 // pred_region
      _
    $region9: #{openml_net_forward.1} parent=1 // pred_fallthru
      _
    // Predicated region
    $region10: #{openml_net_forward.1} parent=1 // pred_check
      _
    $region11: #{openml_net_forward.1} parent=1 // pred_check_branch
      %19 = sbr.rel (0) target = $region13
    $region12: #{openml_net_forward.1} parent=1 // pred_region
      _
    $region13: #{openml_net_forward.1} parent=1 // pred_fallthru
      _
    // Predicated region
    $region14: #{openml_net_forward.1} parent=1 // pred_check
      _
    $region15: #{openml_net_forward.1} parent=1 // pred_check_branch
      %21 = sbr.rel (0) target = $region17
    $region16: #{openml_net_forward.1} parent=1 // pred_region
      _
    $region17: #{openml_net_forward.1} parent=1 // pred_fallthru
      _
    // Predicated region
    $region18: #{openml_net_forward.1} parent=1 // pred_check
      _
    $region19: #{openml_net_forward.1} parent=1 // pred_check_branch
      %23 = sbr.rel (0) target = $region21
    $region20: #{openml_net_forward.1} parent=1 // pred_region
      _
    $region21: #{openml_net_forward.1} parent=1 // pred_fallthru
      _
    %v24 = vld [vmem:[%s0] sm:$0xff]
    %v25 = vld [vmem:[%s1] sm:$0xff]
    %v26 = vld [vmem:[%s1 + $0x8] sm:$0xff]
    %v27 = vld [vmem:[%s1 + $0x10] sm:$0xff]
    %v28 = vld [vmem:[%s1 + $0x18] sm:$0xff]
    %v29 = vld [vmem:[%s1 + $0x20] sm:$0xff]
    %v30 = vld [vmem:[%s1 + $0x28] sm:$0xff]
    %v31 = vld [vmem:[%s1 + $0x30] sm:$0xff]
    %v32 = vld [vmem:[%s1 + $0x38] sm:$0xff]
    %v33 = vld [vmem:[%s2] sm:$0x1]
    %v35 = vperm.slane %v33, 0
    %vm37 = vcmask 523264
    %v39 = vsel %vm37, %v24, 0
    %41 = vmatpush.msra.mxu0 0.0
    %42 = vmatpush.msra.mxu0 0.0
    %43 = vmatpush.msra.mxu0 0.0
    %44 = vmatpush.msra.mxu0 0.0
    %45 = vmatpush.msra.mxu0 0.0
    %46 = vmatpush.msra.mxu0 0.0
    %47 = vmatpush.msra.mxu0 0.0
    %48 = vmatpush.msra.mxu0 0.0
    %49 = vmatpush.msra.mxu0 %v32
    %50 = vmatpush.msra.mxu0 %v31
    %51 = vmatpush.msra.mxu0 %v30
    %52 = vmatpush.msra.mxu0 %v29
    %53 = vmatpush.msra.mxu0 %v28
    %54 = vmatpush.msra.mxu0 %v27
    %55 = vmatpush.msra.mxu0 %v26
    %56 = vmatpush.msra.mxu0 %v25
    %57 = vmatmul.f32.gmra.mxu0 %v39
    %v58 = vpop.f32.mrf.mxu0
    %v59 = vadd.f32 %v35, %v58
    %60 = vdwg.mxu0
    %v61 = vmax.f32 %v59, 0.0
    %vm62 = vcmask 261120
    %63 = vst.msk [vmem:[#allocation4] sm:$0xff] %vm62, %v61
    %v64 = vld [vmem:[%s3] sm:$0xff]
    %v65 = vld [vmem:[%s3 + $0x8] sm:$0xff]
    %v66 = vld [vmem:[%s3 + $0x10] sm:$0xff]
    %v67 = vld [vmem:[%s3 + $0x18] sm:$0xff]
    %v68 = vld [vmem:[%s4] sm:$0x1]
    %v70 = vperm.slane %v68, 0
    %v73 = vsel %vm62, %v61, 0
    %75 = vmatpush.msra.mxu0 0.0
    %76 = vmatpush.msra.mxu0 0.0
    %77 = vmatpush.msra.mxu0 0.0
    %78 = vmatpush.msra.mxu0 0.0
    %79 = vmatpush.msra.mxu0 0.0
    %80 = vmatpush.msra.mxu0 0.0
    %81 = vmatpush.msra.mxu0 0.0
    %82 = vmatpush.msra.mxu0 0.0
    %83 = vmatpush.msra.mxu0 0.0
    %84 = vmatpush.msra.mxu0 0.0
    %85 = vmatpush.msra.mxu0 0.0
    %86 = vmatpush.msra.mxu0 0.0
    %87 = vmatpush.msra.mxu0 %v67
    %88 = vmatpush.msra.mxu0 %v66
    %89 = vmatpush.msra.mxu0 %v65
    %90 = vmatpush.msra.mxu0 %v64
    %91 = vmatmul.f32.gmra.mxu0 %v73
    %v92 = vpop.f32.mrf.mxu0
    %v93 = vadd.f32 %v70, %v92
    %94 = vdwg.mxu0
    %vm95 = vcmask 80896
    %96 = vst.msk [vmem:[#allocation2] sm:$0xff] %vm95, %v93
    // Predicated region
    $region22: #{openml_net_forward.1} parent=1 // pred_check
      _
    $region23: #{openml_net_forward.1} parent=1 // pred_check_branch
      %98 = sbr.rel (0) target = $region25
    $region24: #{openml_net_forward.1} parent=1 // pred_region
      %100 = vsyncadd [#allocation3], 0
      %s102 = sshll.u32 [#allocation2], 4
      %s103 = int_to_ptr.vmem [resolvable:$true] %s102
      %s104 = sshll.u32 %s5, 4
      %s105 = int_to_ptr.hbm [resolvable:$true] %s104
      %107 = dma.vmem_to_hbm [thread:$0]  %s103, 128, %s105, [#allocation3]
    $region25: #{openml_net_forward.1} parent=1 // pred_fallthru
      _
    // Predicated region
    $region26: #{openml_net_forward.1} parent=1 // pred_check
      _
    $region27: #{openml_net_forward.1} parent=1 // pred_check_branch
      %109 = sbr.rel (0) target = $region29
    $region28: #{openml_net_forward.1} parent=1 // pred_region
      %111 = vsyncadd [#allocation5], 0
      %s113 = sshll.u32 [#allocation4], 4
      %s114 = int_to_ptr.vmem [resolvable:$true] %s113
      %s115 = sshll.u32 %s6, 4
      %s116 = int_to_ptr.hbm [resolvable:$true] %s115
      %118 = dma.vmem_to_hbm [thread:$0]  %s114, 128, %s116, [#allocation5]
    $region29: #{openml_net_forward.1} parent=1 // pred_fallthru
      _
    // Predicated region
    $region30: #{openml_net_forward.1} parent=1 // pred_check
      _
    $region31: #{openml_net_forward.1} parent=1 // pred_check_branch
      %120 = sbr.rel (0) target = $region33
    $region32: #{openml_net_forward.1} parent=1 // pred_region
      %122 = dma.done [#allocation3], 128
    $region33: #{openml_net_forward.1} parent=1 // pred_fallthru
      _
    // Predicated region
    $region34: #{openml_net_forward.1} parent=1 // pred_check
      _
    $region35: #{openml_net_forward.1} parent=1 // pred_check_branch
      %124 = sbr.rel (0) target = $region37
    $region36: #{openml_net_forward.1} parent=1 // pred_region
      %126 = dma.done [#allocation5], 128
    $region37: #{openml_net_forward.1} parent=1 // pred_fallthru
      _
    %127 = vsyncpa [#allocation3], 1
    %128 = vsyncpa [#allocation5], 1

</llo_original>
